<compile_context>
chip_gen: v5e
topology: v5e:2x2
jax: 0.10.0
libtpu: 0.0.40
codegen_flags: <defaults>
</compile_context>

<pallas_src>
import functools

import jax
import jax.numpy as jnp
from jax.experimental import pallas as pl
from jax.experimental.pallas import tpu as pltpu


def _round_up(n, m):
    return ((n + m - 1) // m) * m


def luong_decoder_kernel(h_real, ids_ref, h0_ref, enc_ref, emb_ref,
                         gru_w_ref, wc_ref, wo_ref, bias_ref,
                         out_ref, hid_ref):
    f32 = jnp.float32
    bp, hp = h0_ref.shape
    vp = out_ref.shape[1]

    # ---- embedding gather in-kernel (token ids live in SMEM) ----
    # TODO(synk): embedding dropout is identity at inference time; not applied here.
    rows = [emb_ref[pl.ds(ids_ref[i], 1), :] for i in range(bp)]
    x = jnp.concatenate(rows, axis=0)                       # (bp, hp)

    h0 = h0_ref[...]                                        # (bp, hp)

    # ---- GRU single step: two fused matmuls, gate order [r | z | n] ----
    gi = (jnp.dot(x, gru_w_ref[0:hp, :], preferred_element_type=f32)
          + bias_ref[0:1, 0:3 * hp])
    gh = (jnp.dot(h0, gru_w_ref[hp:2 * hp, :], preferred_element_type=f32)
          + bias_ref[1:2, 0:3 * hp])
    r = jax.nn.sigmoid(gi[:, 0:hp] + gh[:, 0:hp])
    z = jax.nn.sigmoid(gi[:, hp:2 * hp] + gh[:, hp:2 * hp])
    n = jnp.tanh(gi[:, 2 * hp:3 * hp] + r * gh[:, 2 * hp:3 * hp])
    h_new = n + z * (h0 - n)                                # == (1-z)*n + z*h0

    # Explicitly zero padded hidden lanes so the carried padded state cannot drift.
    lane = jax.lax.broadcasted_iota(jnp.int32, (bp, hp), 1)
    h_new = jnp.where(lane < h_real, h_new, 0.0)

    # ---- Luong "dot" attention (q = 1): VPU broadcast-multiply + reduce ----
    enc = enc_ref[...]                                      # (bp, t, hp)
    scores = jnp.sum(h_new[:, None, :] * enc, axis=-1)      # (bp, t)
    m = jnp.max(scores, axis=-1, keepdims=True)
    e = jnp.exp(scores - m)
    attn = e * pl.reciprocal(jnp.sum(e, axis=-1, keepdims=True), approx=False)
    ctx = jnp.sum(attn[:, :, None] * enc, axis=1)           # (bp, hp)

    # ---- concat Linear(2h -> h) + tanh: single K = 2hp matmul ----
    cat = jnp.concatenate([h_new, ctx], axis=1)             # (bp, 2hp)
    concat_out = jnp.tanh(
        jnp.dot(cat, wc_ref[...], preferred_element_type=f32)
        + bias_ref[2:3, 0:hp])                              # (bp, hp)

    # ---- output Linear(h -> vocab) + softmax (padded vocab lanes carry -1e30 bias) ----
    logits = (jnp.dot(concat_out, wo_ref[...], preferred_element_type=f32)
              + bias_ref[3:4, 0:vp])
    lm = jnp.max(logits, axis=-1, keepdims=True)
    le = jnp.exp(logits - lm)
    out_ref[...] = le * pl.reciprocal(jnp.sum(le, axis=-1, keepdims=True), approx=False)
    hid_ref[...] = h_new


def prepare_params(params):
    """One-time conversion of PyTorch-layout params into kernel-ready, lane-padded layout.

    PyTorch layouts:
      embedding        : (vocab, h)
      gru weight_ih_l0 : (3h, h), gate order [r, z, n];   weight_hh_l0: (3h, h)
      gru bias_ih/hh   : (3h,)
      concat Linear    : weight (h, 2h), bias (h,)
      out Linear       : weight (vocab, h), bias (vocab,)
    """
    f32 = jnp.float32
    h = params["gru_w_hh"].shape[1]
    vocab = params["w_out"].shape[0]
    hp = _round_up(h, 128)
    vp = _round_up(vocab, 128)
    L = max(3 * hp, vp)

    def pad2(a, rows, cols):
        return jnp.pad(a, ((0, rows - a.shape[0]), (0, cols - a.shape[1])))

    # Embedding table padded on the feature axis -> in-kernel gathers are lane-dense.
    emb = pad2(params["embedding"].astype(f32), params["embedding"].shape[0], hp)

    def pack_gate_w(w):                      # (3h, h) -> (hp, 3hp), transposed per gate
        return jnp.concatenate(
            [pad2(w[g * h:(g + 1) * h].T.astype(f32), hp, hp) for g in range(3)], axis=1)

    def pack_gate_b(bvec):                   # (3h,) -> (3hp,)
        return jnp.concatenate(
            [jnp.pad(bvec[g * h:(g + 1) * h].astype(f32), (0, hp - h)) for g in range(3)])

    gru_w = jnp.concatenate([pack_gate_w(params["gru_w_ih"]),
                             pack_gate_w(params["gru_w_hh"])], axis=0)       # (2hp, 3hp)

    wc = params["w_concat"].astype(f32)      # (h, 2h); torch: y = cat @ wc.T + bc
    wc_packed = jnp.concatenate(
        [pad2(wc[:, 0:h].T, hp, hp),         # rows 0:hp    -> applied to rnn_output
         pad2(wc[:, h:2 * h].T, hp, hp)],    # rows hp:2hp  -> applied to context
        axis=0)                                                             # (2hp, hp)

    wo = pad2(params["w_out"].T.astype(f32), hp, vp)                        # (hp, vp)

    # All biases packed into ONE VMEM block (cuts per-call DMA count).
    b_ih = jnp.pad(pack_gate_b(params["gru_b_ih"]), (0, L - 3 * hp))
    b_hh = jnp.pad(pack_gate_b(params["gru_b_hh"]), (0, L - 3 * hp))
    b_c = jnp.pad(jnp.pad(params["b_concat"].astype(f32), (0, hp - h)), (0, L - hp))
    b_o = jnp.full((L,), -1e30, f32).at[:vocab].set(params["b_out"].astype(f32))
    biases = jnp.stack([b_ih, b_hh, b_c, b_o], axis=0)                      # (4, L)

    return dict(emb=emb, gru_w=gru_w, wc=wc_packed, wo=wo, biases=biases,
                h=h, hp=hp, vocab=vocab, vp=vp)


def prepare_encoder(encoder_outputs, h, hp, bp):
    """(t, b, h) -> (bp, t, hp), batch-major + lane/sublane padded. Loop-invariant:
    call ONCE per source sequence, not per decode step."""
    t, b, _ = encoder_outputs.shape
    enc = jnp.transpose(encoder_outputs.astype(jnp.float32), (1, 0, 2))     # (b, t, h)
    return jnp.pad(enc, ((0, bp - b), (0, 0), (0, hp - h)))


def prepare_hidden(pre_hidden, h, hp, bp):
    """(1, b, h) -> (bp, hp). Call once before the decode loop; keep the hidden in
    this padded form across steps and slice only at the end."""
    b = pre_hidden.shape[1]
    return jnp.pad(pre_hidden[0].astype(jnp.float32), ((0, bp - b), (0, hp - h)))


def decoder_step(prepped, ids_padded, hidden_padded, enc_padded):
    """One decode step on padded state.
    ids_padded: (bp,) int32; hidden_padded: (bp, hp); enc_padded: (bp, t, hp).
    Returns (probs (bp, vp), new hidden (bp, hp)) — both padded."""
    bp, hp = hidden_padded.shape
    vp = prepped["vp"]

    vmem = pl.BlockSpec(memory_space=pltpu.MemorySpace.VMEM)
    smem = pl.BlockSpec(memory_space=pltpu.MemorySpace.SMEM)
    kernel = functools.partial(luong_decoder_kernel, prepped["h"])

    inputs = (ids_padded, hidden_padded, enc_padded, prepped["emb"],
              prepped["gru_w"], prepped["wc"], prepped["wo"], prepped["biases"])

    return pl.pallas_call(
        kernel,
        out_shape=(jax.ShapeDtypeStruct((bp, vp), jnp.float32),
                   jax.ShapeDtypeStruct((bp, hp), jnp.float32)),
        in_specs=[smem] + [vmem] * (len(inputs) - 1),
        out_specs=(vmem, vmem),
        compiler_params=pltpu.CompilerParams(vmem_limit_bytes=32 * 1024 * 1024),
    )(*inputs)


def luong_attn_decoder_forward(prepped, input_step, pre_hidden, encoder_outputs):
    """Single-step forward matching the PyTorch module signature.
    input_step: (1, b) int32; pre_hidden: (1, b, h); encoder_outputs: (t, b, h).
    Returns (softmax probs (b, vocab), new hidden (1, b, h)).
    For autoregressive decoding, call prepare_encoder/prepare_hidden once and loop
    over decoder_step instead (padded state carried, no per-step pad/slice)."""
    h, hp = prepped["h"], prepped["hp"]
    vocab = prepped["vocab"]
    b = input_step.shape[1]
    bp = _round_up(max(b, 8), 8)

    ids = jnp.pad(input_step[0].astype(jnp.int32), (0, bp - b))
    h0p = prepare_hidden(pre_hidden, h, hp, bp)
    encp = prepare_encoder(encoder_outputs, h, hp, bp)

    out_p, hid_p = decoder_step(prepped, ids, h0p, encp)
    return out_p[:b, :vocab], hid_p[None, :b, :h]


def reference_forward(params, input_step, pre_hidden, encoder_outputs):
    """Pure-JAX reference matching PyTorch semantics (for validation)."""
    h = params["gru_w_hh"].shape[1]
    x = params["embedding"][input_step][0].astype(jnp.float32)
    h0 = pre_hidden[0].astype(jnp.float32)
    gi = x @ params["gru_w_ih"].T + params["gru_b_ih"]
    gh = h0 @ params["gru_w_hh"].T + params["gru_b_hh"]
    r = jax.nn.sigmoid(gi[:, :h] + gh[:, :h])
    z = jax.nn.sigmoid(gi[:, h:2 * h] + gh[:, h:2 * h])
    n = jnp.tanh(gi[:, 2 * h:] + r * gh[:, 2 * h:])
    h_new = (1.0 - z) * n + z * h0
    enc = encoder_outputs.astype(jnp.float32)
    scores = jnp.einsum('bh,tbh->bt', h_new, enc)
    attn = jax.nn.softmax(scores, axis=-1)
    context = jnp.einsum('bt,tbh->bh', attn, enc)
    cat = jnp.concatenate([h_new, context], axis=1)
    concat_out = jnp.tanh(cat @ params["w_concat"].T + params["b_concat"])
    logits = concat_out @ params["w_out"].T + params["b_out"]
    return jax.nn.softmax(logits, axis=1), h_new[None]


if __name__ == "__main__":
    B, H, T, VOCAB = 2, 32, 8, 64
    key = jax.random.PRNGKey(0)
    ks = jax.random.split(key, 13)
    scale = 1.0 / jnp.sqrt(jnp.float32(H))

    params = {
        "embedding": jax.random.normal(ks[0], (VOCAB, H), jnp.float32) * 0.1,
        "gru_w_ih": jax.random.normal(ks[1], (3 * H, H), jnp.float32) * scale,
        "gru_w_hh": jax.random.normal(ks[2], (3 * H, H), jnp.float32) * scale,
        "gru_b_ih": jax.random.normal(ks[3], (3 * H,), jnp.float32) * scale,
        "gru_b_hh": jax.random.normal(ks[4], (3 * H,), jnp.float32) * scale,
        "w_concat": jax.random.normal(ks[5], (H, 2 * H), jnp.float32) * scale,
        "b_concat": jax.random.normal(ks[6], (H,), jnp.float32) * scale,
        "w_out": jax.random.normal(ks[7], (VOCAB, H), jnp.float32) * scale,
        "b_out": jax.random.normal(ks[8], (VOCAB,), jnp.float32) * scale,
    }

    input_step = jax.random.randint(ks[9], (1, B), 0, VOCAB)              # (t=1, b)
    pre_hidden = jax.random.normal(ks[10], (1, B, H), jnp.float32)        # (n_layers, b, h)
    encoder_outputs = jax.random.normal(ks[11], (T, B, H), jnp.float32)   # (t, b, h)

    prepped = prepare_params(params)   # one-time, kernel-ready weight layout

    # --- single-step forward (PyTorch module semantics) ---
    output, hidden = luong_attn_decoder_forward(
        prepped, input_step, pre_hidden, encoder_outputs)
    jax.block_until_ready((output, hidden))

    assert output.shape == (B, VOCAB)
    assert hidden.shape == (1, B, H)
    assert bool(jnp.all(jnp.abs(jnp.sum(output, axis=1) - 1.0) < 1e-4))

    ref_out, ref_hid = reference_forward(params, input_step, pre_hidden, encoder_outputs)
    assert bool(jnp.allclose(output, ref_out, atol=1e-2, rtol=1e-2))
    assert bool(jnp.allclose(hidden, ref_hid, atol=1e-2, rtol=1e-2))

    # --- multi-step decode: enc/hidden prep hoisted, padded hidden carried across steps ---
    STEPS = 3
    tokens = jax.random.randint(ks[12], (STEPS, B), 0, VOCAB)
    bp = _round_up(max(B, 8), 8)
    h_padded = prepare_hidden(pre_hidden, H, prepped["hp"], bp)           # once
    enc_padded = prepare_encoder(encoder_outputs, H, prepped["hp"], bp)   # once
    ref_h = pre_hidden
    for s in range(STEPS):
        ids = jnp.pad(tokens[s].astype(jnp.int32), (0, bp - B))
        out_p, h_padded = decoder_step(prepped, ids, h_padded, enc_padded)
        ref_out_s, ref_h = reference_forward(params, tokens[s:s + 1], ref_h, encoder_outputs)
        assert bool(jnp.allclose(out_p[:B, :VOCAB], ref_out_s, atol=1e-2, rtol=1e-2))
        assert bool(jnp.allclose(h_padded[:B, :H], ref_h[0], atol=1e-2, rtol=1e-2))
    jax.block_until_ready(h_padded)

    print("KERNEL_OK")
</pallas_src>

<mosaic_0001>
module attributes {stable_mosaic.version = 11 : i64} {
  func.func @luong_decoder_kernel(%arg0: memref<8xi32, #tpu.memory_space<smem>>, %arg1: memref<8x128xf32, #tpu.memory_space<vmem>>, %arg2: memref<8x8x128xf32, #tpu.memory_space<vmem>>, %arg3: memref<64x128xf32, #tpu.memory_space<vmem>>, %arg4: memref<256x384xf32, #tpu.memory_space<vmem>>, %arg5: memref<256x128xf32, #tpu.memory_space<vmem>>, %arg6: memref<128x128xf32, #tpu.memory_space<vmem>>, %arg7: memref<4x384xf32, #tpu.memory_space<vmem>>, %arg8: memref<8x128xf32, #tpu.memory_space<vmem>>, %arg9: memref<8x128xf32, #tpu.memory_space<vmem>>) attributes {dimension_semantics = [], scalar_prefetch = 0 : i64, scratch_operands = 0 : i64, tpu.core_type = #tpu.core_type<tc>} {
    %c0 = arith.constant 0 : index
    %0 = memref.load %arg0[%c0] : memref<8xi32, #tpu.memory_space<smem>>
    %1 = arith.index_cast %0 : i32 to index
    %c0_0 = arith.constant 0 : index
    %2 = vector.load %arg3[%1, %c0_0] : memref<64x128xf32, #tpu.memory_space<vmem>>, vector<1x128xf32>
    %c1 = arith.constant 1 : index
    %3 = memref.load %arg0[%c1] : memref<8xi32, #tpu.memory_space<smem>>
    %4 = arith.index_cast %3 : i32 to index
    %c0_1 = arith.constant 0 : index
    %5 = vector.load %arg3[%4, %c0_1] : memref<64x128xf32, #tpu.memory_space<vmem>>, vector<1x128xf32>
    %c2 = arith.constant 2 : index
    %6 = memref.load %arg0[%c2] : memref<8xi32, #tpu.memory_space<smem>>
    %7 = arith.index_cast %6 : i32 to index
    %c0_2 = arith.constant 0 : index
    %8 = vector.load %arg3[%7, %c0_2] : memref<64x128xf32, #tpu.memory_space<vmem>>, vector<1x128xf32>
    %c3 = arith.constant 3 : index
    %9 = memref.load %arg0[%c3] : memref<8xi32, #tpu.memory_space<smem>>
    %10 = arith.index_cast %9 : i32 to index
    %c0_3 = arith.constant 0 : index
    %11 = vector.load %arg3[%10, %c0_3] : memref<64x128xf32, #tpu.memory_space<vmem>>, vector<1x128xf32>
    %c4 = arith.constant 4 : index
    %12 = memref.load %arg0[%c4] : memref<8xi32, #tpu.memory_space<smem>>
    %13 = arith.index_cast %12 : i32 to index
    %c0_4 = arith.constant 0 : index
    %14 = vector.load %arg3[%13, %c0_4] : memref<64x128xf32, #tpu.memory_space<vmem>>, vector<1x128xf32>
    %c5 = arith.constant 5 : index
    %15 = memref.load %arg0[%c5] : memref<8xi32, #tpu.memory_space<smem>>
    %16 = arith.index_cast %15 : i32 to index
    %c0_5 = arith.constant 0 : index
    %17 = vector.load %arg3[%16, %c0_5] : memref<64x128xf32, #tpu.memory_space<vmem>>, vector<1x128xf32>
    %c6 = arith.constant 6 : index
    %18 = memref.load %arg0[%c6] : memref<8xi32, #tpu.memory_space<smem>>
    %19 = arith.index_cast %18 : i32 to index
    %c0_6 = arith.constant 0 : index
    %20 = vector.load %arg3[%19, %c0_6] : memref<64x128xf32, #tpu.memory_space<vmem>>, vector<1x128xf32>
    %c7 = arith.constant 7 : index
    %21 = memref.load %arg0[%c7] : memref<8xi32, #tpu.memory_space<smem>>
    %22 = arith.index_cast %21 : i32 to index
    %c0_7 = arith.constant 0 : index
    %23 = vector.load %arg3[%22, %c0_7] : memref<64x128xf32, #tpu.memory_space<vmem>>, vector<1x128xf32>
    %24 = tpu.concatenate %2, %5, %8, %11, %14, %17, %20, %23 in 0 : vector<1x128xf32>, vector<1x128xf32>, vector<1x128xf32>, vector<1x128xf32>, vector<1x128xf32>, vector<1x128xf32>, vector<1x128xf32>, vector<1x128xf32> -> vector<8x128xf32>
    %c0_8 = arith.constant 0 : index
    %c0_9 = arith.constant 0 : index
    %25 = vector.load %arg1[%c0_8, %c0_9] : memref<8x128xf32, #tpu.memory_space<vmem>>, vector<8x128xf32>
    %c0_10 = arith.constant 0 : index
    %c0_11 = arith.constant 0 : index
    %26 = vector.load %arg4[%c0_10, %c0_11] : memref<256x384xf32, #tpu.memory_space<vmem>>, vector<128x384xf32>
    %cst = arith.constant dense<0.000000e+00> : vector<8x384xf32>
    %27 = tpu.matmul %24, %26, %cst {dimension_numbers = #tpu.dot_dimension_numbers<[1], [0], [0], [1], [0, 0, 1, 1], [], []>} : vector<8x128xf32>, vector<128x384xf32>, vector<8x384xf32> -> vector<8x384xf32>
    %c0_12 = arith.constant 0 : index
    %c0_13 = arith.constant 0 : index
    %28 = vector.load %arg7[%c0_12, %c0_13] : memref<4x384xf32, #tpu.memory_space<vmem>>, vector<1x384xf32>
    %29 = vector.broadcast %28 : vector<1x384xf32> to vector<8x384xf32>
    %30 = arith.addf %27, %29 : vector<8x384xf32>
    %c128 = arith.constant 128 : index
    %c0_14 = arith.constant 0 : index
    %31 = vector.load %arg4[%c128, %c0_14] : memref<256x384xf32, #tpu.memory_space<vmem>>, vector<128x384xf32>
    %cst_15 = arith.constant dense<0.000000e+00> : vector<8x384xf32>
    %32 = tpu.matmul %25, %31, %cst_15 {dimension_numbers = #tpu.dot_dimension_numbers<[1], [0], [0], [1], [0, 0, 1, 1], [], []>} : vector<8x128xf32>, vector<128x384xf32>, vector<8x384xf32> -> vector<8x384xf32>
    %c1_16 = arith.constant 1 : index
    %c0_17 = arith.constant 0 : index
    %33 = vector.load %arg7[%c1_16, %c0_17] : memref<4x384xf32, #tpu.memory_space<vmem>>, vector<1x384xf32>
    %34 = vector.broadcast %33 : vector<1x384xf32> to vector<8x384xf32>
    %35 = arith.addf %32, %34 : vector<8x384xf32>
    %36 = vector.extract_strided_slice %30 {offsets = [0, 0], sizes = [8, 128], strides = [1, 1]} : vector<8x384xf32> to vector<8x128xf32>
    %37 = vector.extract_strided_slice %35 {offsets = [0, 0], sizes = [8, 128], strides = [1, 1]} : vector<8x384xf32> to vector<8x128xf32>
    %38 = arith.addf %36, %37 : vector<8x128xf32>
    %39 = arith.negf %38 : vector<8x128xf32>
    %40 = math.exp %39 : vector<8x128xf32>
    %cst_18 = arith.constant 1.000000e+00 : f32
    %41 = vector.broadcast %cst_18 : f32 to vector<8x128xf32>
    %42 = arith.addf %41, %40 : vector<8x128xf32>
    %43 = arith.divf %41, %42 : vector<8x128xf32>
    %44 = vector.extract_strided_slice %30 {offsets = [0, 128], sizes = [8, 128], strides = [1, 1]} : vector<8x384xf32> to vector<8x128xf32>
    %45 = vector.extract_strided_slice %35 {offsets = [0, 128], sizes = [8, 128], strides = [1, 1]} : vector<8x384xf32> to vector<8x128xf32>
    %46 = arith.addf %44, %45 : vector<8x128xf32>
    %47 = arith.negf %46 : vector<8x128xf32>
    %48 = math.exp %47 : vector<8x128xf32>
    %cst_19 = arith.constant 1.000000e+00 : f32
    %49 = vector.broadcast %cst_19 : f32 to vector<8x128xf32>
    %50 = arith.addf %49, %48 : vector<8x128xf32>
    %51 = arith.divf %49, %50 : vector<8x128xf32>
    %52 = vector.extract_strided_slice %30 {offsets = [0, 256], sizes = [8, 128], strides = [1, 1]} : vector<8x384xf32> to vector<8x128xf32>
    %53 = vector.extract_strided_slice %35 {offsets = [0, 256], sizes = [8, 128], strides = [1, 1]} : vector<8x384xf32> to vector<8x128xf32>
    %54 = arith.mulf %43, %53 : vector<8x128xf32>
    %55 = arith.addf %52, %54 : vector<8x128xf32>
    %56 = math.tanh %55 : vector<8x128xf32>
    %57 = arith.subf %25, %56 : vector<8x128xf32>
    %58 = arith.mulf %51, %57 : vector<8x128xf32>
    %59 = arith.addf %56, %58 : vector<8x128xf32>
    %60 = tpu.iota {dimensions = array<i32: 1>} : vector<8x128xi32>
    %c32_i32 = arith.constant 32 : i32
    %61 = vector.broadcast %c32_i32 : i32 to vector<8x128xi32>
    %62 = arith.cmpi slt, %60, %61 : vector<8x128xi32>
    %cst_20 = arith.constant 0.000000e+00 : f32
    %63 = vector.broadcast %cst_20 : f32 to vector<8x128xf32>
    %64 = arith.select %62, %59, %63 : vector<8x128xi1>, vector<8x128xf32>
    %c0_21 = arith.constant 0 : index
    %c0_22 = arith.constant 0 : index
    %c0_23 = arith.constant 0 : index
    %65 = vector.load %arg2[%c0_21, %c0_22, %c0_23] : memref<8x8x128xf32, #tpu.memory_space<vmem>>, vector<8x8x128xf32>
    %66 = vector.shape_cast %64 : vector<8x128xf32> to vector<8x1x128xf32>
    %67 = vector.broadcast %66 : vector<8x1x128xf32> to vector<8x8x128xf32>
    %68 = arith.mulf %67, %65 : vector<8x8x128xf32>
    %cst_24 = arith.constant dense<0.000000e+00> : vector<8x8xf32>
    %69 = vector.multi_reduction <add>, %68, %cst_24 [2] : vector<8x8x128xf32> to vector<8x8xf32>
    %cst_25 = arith.constant dense<0xFF800000> : vector<8xf32>
    %70 = vector.multi_reduction <maximumf>, %69, %cst_25 [1] : vector<8x8xf32> to vector<8xf32>
    %71 = vector.shape_cast %70 : vector<8xf32> to vector<8x1xf32>
    %72 = vector.broadcast %71 : vector<8x1xf32> to vector<8x8xf32>
    %73 = arith.subf %69, %72 : vector<8x8xf32>
    %74 = math.exp %73 : vector<8x8xf32>
    %cst_26 = arith.constant dense<0.000000e+00> : vector<8xf32>
    %75 = vector.multi_reduction <add>, %74, %cst_26 [1] : vector<8x8xf32> to vector<8xf32>
    %76 = vector.shape_cast %75 : vector<8xf32> to vector<8x1xf32>
    %77 = tpu.reciprocal %76 : vector<8x1xf32> -> vector<8x1xf32>
    %78 = vector.broadcast %77 : vector<8x1xf32> to vector<8x8xf32>
    %79 = arith.mulf %74, %78 : vector<8x8xf32>
    %80 = vector.shape_cast %79 : vector<8x8xf32> to vector<8x8x1xf32>
    %81 = vector.broadcast %80 : vector<8x8x1xf32> to vector<8x8x128xf32>
    %82 = arith.mulf %81, %65 : vector<8x8x128xf32>
    %cst_27 = arith.constant dense<0.000000e+00> : vector<8x128xf32>
    %83 = vector.multi_reduction <add>, %82, %cst_27 [1] : vector<8x8x128xf32> to vector<8x128xf32>
    %84 = tpu.concatenate %64, %83 in 1 : vector<8x128xf32>, vector<8x128xf32> -> vector<8x256xf32>
    %c0_28 = arith.constant 0 : index
    %c0_29 = arith.constant 0 : index
    %85 = vector.load %arg5[%c0_28, %c0_29] : memref<256x128xf32, #tpu.memory_space<vmem>>, vector<256x128xf32>
    %cst_30 = arith.constant dense<0.000000e+00> : vector<8x128xf32>
    %86 = tpu.matmul %84, %85, %cst_30 {dimension_numbers = #tpu.dot_dimension_numbers<[1], [0], [0], [1], [0, 0, 1, 1], [], []>} : vector<8x256xf32>, vector<256x128xf32>, vector<8x128xf32> -> vector<8x128xf32>
    %c2_31 = arith.constant 2 : index
    %c0_32 = arith.constant 0 : index
    %87 = vector.load %arg7[%c2_31, %c0_32] : memref<4x384xf32, #tpu.memory_space<vmem>>, vector<1x128xf32>
    %88 = vector.broadcast %87 : vector<1x128xf32> to vector<8x128xf32>
    %89 = arith.addf %86, %88 : vector<8x128xf32>
    %90 = math.tanh %89 : vector<8x128xf32>
    %c0_33 = arith.constant 0 : index
    %c0_34 = arith.constant 0 : index
    %91 = vector.load %arg6[%c0_33, %c0_34] : memref<128x128xf32, #tpu.memory_space<vmem>>, vector<128x128xf32>
    %cst_35 = arith.constant dense<0.000000e+00> : vector<8x128xf32>
    %92 = tpu.matmul %90, %91, %cst_35 {dimension_numbers = #tpu.dot_dimension_numbers<[1], [0], [0], [1], [0, 0, 1, 1], [], []>} : vector<8x128xf32>, vector<128x128xf32>, vector<8x128xf32> -> vector<8x128xf32>
    %c3_36 = arith.constant 3 : index
    %c0_37 = arith.constant 0 : index
    %93 = vector.load %arg7[%c3_36, %c0_37] : memref<4x384xf32, #tpu.memory_space<vmem>>, vector<1x128xf32>
    %94 = vector.broadcast %93 : vector<1x128xf32> to vector<8x128xf32>
    %95 = arith.addf %92, %94 : vector<8x128xf32>
    %cst_38 = arith.constant dense<0xFF800000> : vector<8xf32>
    %96 = vector.multi_reduction <maximumf>, %95, %cst_38 [1] : vector<8x128xf32> to vector<8xf32>
    %97 = vector.shape_cast %96 : vector<8xf32> to vector<8x1xf32>
    %98 = vector.broadcast %97 : vector<8x1xf32> to vector<8x128xf32>
    %99 = arith.subf %95, %98 : vector<8x128xf32>
    %100 = math.exp %99 : vector<8x128xf32>
    %cst_39 = arith.constant dense<0.000000e+00> : vector<8xf32>
    %101 = vector.multi_reduction <add>, %100, %cst_39 [1] : vector<8x128xf32> to vector<8xf32>
    %102 = vector.shape_cast %101 : vector<8xf32> to vector<8x1xf32>
    %103 = tpu.reciprocal %102 : vector<8x1xf32> -> vector<8x1xf32>
    %104 = vector.broadcast %103 : vector<8x1xf32> to vector<8x128xf32>
    %105 = arith.mulf %100, %104 : vector<8x128xf32>
    %c0_40 = arith.constant 0 : index
    %c0_41 = arith.constant 0 : index
    %106 = vector.load %arg8[%c0_40, %c0_41] : memref<8x128xf32, #tpu.memory_space<vmem>>, vector<8x128xf32>
    tpu.vector_store %arg8[%c0_40, %c0_41], %105 {strides = array<i32>} : memref<8x128xf32, #tpu.memory_space<vmem>>, vector<8x128xf32>,
    %c0_42 = arith.constant 0 : index
    %c0_43 = arith.constant 0 : index
    %107 = vector.load %arg9[%c0_42, %c0_43] : memref<8x128xf32, #tpu.memory_space<vmem>>, vector<8x128xf32>
    tpu.vector_store %arg9[%c0_42, %c0_43], %64 {strides = array<i32>} : memref<8x128xf32, #tpu.memory_space<vmem>>, vector<8x128xf32>,
    return
  }
}

</mosaic_0001>

<llo_original>
// kernel: tpu_custom_call.1
$region0: #{tpu_custom_call.1}
  #allocation0 [shape = 'u32[]', space=smem, size = 0x4, offset = 0x4, fixed_abs, tag = 'smem constant byte address 0x4 - core index']
  #allocation1 [shape = 'u32[72,128]{1,0:T(1,128)}', space=vmem, size = 0x9000, scoped, tag = 'internal scratch']
  %s0 = inlined_call_operand.hbm [shape: s32[8], index: 0, kind: input, shape index: {}]
  %s1 = inlined_call_operand.hbm [shape: f32[8,128], index: 1, kind: input, shape index: {}]
  %s2 = inlined_call_operand.hbm [shape: f32[8,8,128], index: 2, kind: input, shape index: {}]
  %s3 = inlined_call_operand.hbm [shape: f32[64,128], index: 3, kind: input, shape index: {}]
  %s4 = inlined_call_operand.hbm [shape: f32[256,384], index: 4, kind: input, shape index: {}]
  %s5 = inlined_call_operand.hbm [shape: f32[256,128], index: 5, kind: input, shape index: {}]
  %s6 = inlined_call_operand.hbm [shape: f32[128,128], index: 6, kind: input, shape index: {}]
  %s7 = inlined_call_operand.hbm [shape: f32[4,384], index: 7, kind: input, shape index: {}]
  %s8 = inlined_call_operand.hbm [shape: f32[8,128], index: 8, kind: output, shape index: {0}]
  %s9 = inlined_call_operand.hbm [shape: f32[8,128], index: 9, kind: output, shape index: {1}]
  %10 = xla_tuple %s8, %s9
  %s11 = sld [smem:[#allocation0]]
  $region82: #{tpu_custom_call.1} parent=0
    _
  %s13 = ssub.s32 1, %s11
  %s14 = scalar_select 0, %s13, %s11
  $region1: #{tpu_custom_call.1} parent=0
    #allocation2 [shape = 'u8[512]{0}', space=smem, size = 0x200, scoped, tag = 'input window, operand 0, single buffered']
    #allocation3 [shape = 's32[1]{0}', space=sflag, size = 0x4, scoped, tag = 'scoped memory for tpu_custom_call.1']
    #allocation4 [shape = 's32[1]{0}', space=sflag, size = 0x4, scoped, tag = 'scoped memory for tpu_custom_call.1']
    #allocation5 [shape = 's32[1]{0}', space=sflag, size = 0x4, scoped, tag = 'scoped memory for tpu_custom_call.1']
    #allocation6 [shape = 'u8[4096]{0}', space=vmem, size = 0x1000, scoped, tag = 'input window, operand 1, single buffered']
    #allocation7 [shape = 'u8[32768]{0}', space=vmem, size = 0x8000, scoped, tag = 'input window, operand 2, single buffered']
    #allocation8 [shape = 's32[1]{0}', space=sflag, size = 0x4, scoped, tag = 'scoped memory for tpu_custom_call.1']
    #allocation9 [shape = 'u8[32768]{0}', space=vmem, size = 0x8000, scoped, tag = 'input window, operand 3, single buffered']
    #allocation10 [shape = 'u8[393216]{0}', space=vmem, size = 0x60000, scoped, tag = 'input window, operand 4, single buffered']
    #allocation11 [shape = 's32[1]{0}', space=sflag, size = 0x4, scoped, tag = 'scoped memory for tpu_custom_call.1']
    #allocation12 [shape = 'u8[131072]{0}', space=vmem, size = 0x20000, scoped, tag = 'input window, operand 5, single buffered']
    #allocation13 [shape = 'u8[65536]{0}', space=vmem, size = 0x10000, scoped, tag = 'input window, operand 6, single buffered']
    #allocation14 [shape = 's32[1]{0}', space=sflag, size = 0x4, scoped, tag = 'scoped memory for tpu_custom_call.1']
    #allocation15 [shape = 'u8[6144]{0}', space=vmem, size = 0x1800, scoped, tag = 'input window, operand 7, single buffered']
    #allocation16 [shape = 'u8[4096]{0}', space=vmem, size = 0x1000, scoped, tag = 'output window, operand 0, single buffered']
    #allocation17 [shape = 'u8[4096]{0}', space=vmem, size = 0x1000, scoped, tag = 'output window, operand 1, single buffered']
    #allocation18 [shape = 's32[1]{0}', space=sflag, size = 0x4, scoped, tag = 'scoped memory for tpu_custom_call.1']
    %15 = vsyncpa [#allocation5], 0
    %16 = vsyncpa [#allocation3], 0
    %17 = vsyncpa [#allocation8], 0
    %18 = vsyncpa [#allocation11], 0
    %19 = vsyncpa [#allocation14], 0
    %20 = vsyncpa [#allocation4], 0
    %21 = vsyncpa [#allocation18], 0
    // Predicated region
    $region2: #{tpu_custom_call.1} parent=1 // pred_check
      _
    $region3: #{tpu_custom_call.1} parent=1 // pred_check_branch
      %23 = sbr.rel (0) target = $region5
    $region4: #{tpu_custom_call.1} parent=1 // pred_region
      %25 = vsyncadd [#allocation5], 0
      %s27 = sshll.u32 %s0, 4
      %s28 = int_to_ptr.hbm [resolvable:$true] %s27
      %30 = dma.hbm_to_smem %s28, 16, [#allocation2], [#allocation5]
    $region5: #{tpu_custom_call.1} parent=1 // pred_fallthru
      _
    // Predicated region
    $region6: #{tpu_custom_call.1} parent=1 // pred_check
      _
    $region7: #{tpu_custom_call.1} parent=1 // pred_check_branch
      %32 = sbr.rel (0) target = $region9
    $region8: #{tpu_custom_call.1} parent=1 // pred_region
      %34 = vsyncadd [#allocation3], 0
      %s36 = sshll.u32 %s1, 4
      %s37 = int_to_ptr.hbm [resolvable:$true] %s36
      %s38 = sshll.u32 [#allocation6], 4
      %s39 = int_to_ptr.vmem [resolvable:$true] %s38
      %41 = dma.hbm_to_vmem [thread:$0]  %s37, 128, %s39, [#allocation3]
    $region9: #{tpu_custom_call.1} parent=1 // pred_fallthru
      _
    // Predicated region
    $region10: #{tpu_custom_call.1} parent=1 // pred_check
      _
    $region11: #{tpu_custom_call.1} parent=1 // pred_check_branch
      %43 = sbr.rel (0) target = $region13
    $region12: #{tpu_custom_call.1} parent=1 // pred_region
      %45 = vsyncadd [#allocation8], 0
      %s46 = sshll.u32 %s2, 4
      %s47 = int_to_ptr.hbm [resolvable:$true] %s46
      %s48 = sshll.u32 [#allocation7], 4
      %s49 = int_to_ptr.vmem [resolvable:$true] %s48
      %54 = dma.hbm_to_vmem [thread:$0]  %s47, 1024, %s49, [#allocation8], 128, 128, 8
    $region13: #{tpu_custom_call.1} parent=1 // pred_fallthru
      _
    // Predicated region
    $region14: #{tpu_custom_call.1} parent=1 // pred_check
      _
    $region15: #{tpu_custom_call.1} parent=1 // pred_check_branch
      %56 = sbr.rel (0) target = $region17
    $region16: #{tpu_custom_call.1} parent=1 // pred_region
      %58 = vsyncadd [#allocation8], 0
      %s59 = sshll.u32 %s3, 4
      %s60 = int_to_ptr.hbm [resolvable:$true] %s59
      %s61 = sshll.u32 [#allocation9], 4
      %s62 = int_to_ptr.vmem [resolvable:$true] %s61
      %67 = dma.hbm_to_vmem [thread:$0]  %s60, 1024, %s62, [#allocation8], 128, 128, 8
    $region17: #{tpu_custom_call.1} parent=1 // pred_fallthru
      _
    // Predicated region
    $region18: #{tpu_custom_call.1} parent=1 // pred_check
      _
    $region19: #{tpu_custom_call.1} parent=1 // pred_check_branch
      %69 = sbr.rel (0) target = $region21
    $region20: #{tpu_custom_call.1} parent=1 // pred_region
      %71 = vsyncadd [#allocation11], 0
      %s72 = sshll.u32 %s4, 4
      %s73 = int_to_ptr.hbm [resolvable:$true] %s72
      %s74 = sshll.u32 [#allocation10], 4
      %s75 = int_to_ptr.vmem [resolvable:$true] %s74
      %80 = dma.hbm_to_vmem [thread:$0]  %s73, 12288, %s75, [#allocation11], 384, 384, 24
    $region21: #{tpu_custom_call.1} parent=1 // pred_fallthru
      _
    // Predicated region
    $region22: #{tpu_custom_call.1} parent=1 // pred_check
      _
    $region23: #{tpu_custom_call.1} parent=1 // pred_check_branch
      %82 = sbr.rel (0) target = $region25
    $region24: #{tpu_custom_call.1} parent=1 // pred_region
      %84 = vsyncadd [#allocation11], 0
      %s85 = sshll.u32 %s5, 4
      %s86 = int_to_ptr.hbm [resolvable:$true] %s85
      %s87 = sshll.u32 [#allocation12], 4
      %s88 = int_to_ptr.vmem [resolvable:$true] %s87
      %93 = dma.hbm_to_vmem [thread:$0]  %s86, 4096, %s88, [#allocation11], 128, 128, 8
    $region25: #{tpu_custom_call.1} parent=1 // pred_fallthru
      _
    // Predicated region
    $region26: #{tpu_custom_call.1} parent=1 // pred_check
      _
    $region27: #{tpu_custom_call.1} parent=1 // pred_check_branch
      %95 = sbr.rel (0) target = $region29
    $region28: #{tpu_custom_call.1} parent=1 // pred_region
      %97 = vsyncadd [#allocation14], 0
      %s98 = sshll.u32 %s6, 4
      %s99 = int_to_ptr.hbm [resolvable:$true] %s98
      %s100 = sshll.u32 [#allocation13], 4
      %s101 = int_to_ptr.vmem [resolvable:$true] %s100
      %106 = dma.hbm_to_vmem [thread:$0]  %s99, 2048, %s101, [#allocation14], 128, 128, 8
    $region29: #{tpu_custom_call.1} parent=1 // pred_fallthru
      _
    // Predicated region
    $region30: #{tpu_custom_call.1} parent=1 // pred_check
      _
    $region31: #{tpu_custom_call.1} parent=1 // pred_check_branch
      %108 = sbr.rel (0) target = $region33
    $region32: #{tpu_custom_call.1} parent=1 // pred_region
      %110 = vsyncadd [#allocation14], 0
      %s112 = sshll.u32 %s7, 4
      %s113 = int_to_ptr.hbm [resolvable:$true] %s112
      %s114 = sshll.u32 [#allocation15], 4
      %s115 = int_to_ptr.vmem [resolvable:$true] %s114
      %117 = dma.hbm_to_vmem [thread:$0]  %s113, 192, %s115, [#allocation14]
    $region33: #{tpu_custom_call.1} parent=1 // pred_fallthru
      _
    // Predicated region
    $region34: #{tpu_custom_call.1} parent=1 // pred_check
      _
    $region35: #{tpu_custom_call.1} parent=1 // pred_check_branch
      %119 = sbr.rel (0) target = $region37
    $region36: #{tpu_custom_call.1} parent=1 // pred_region
      %121 = dma.done [#allocation5], 16
    $region37: #{tpu_custom_call.1} parent=1 // pred_fallthru
      _
    // Predicated region
    $region38: #{tpu_custom_call.1} parent=1 // pred_check
      _
    $region39: #{tpu_custom_call.1} parent=1 // pred_check_branch
      %123 = sbr.rel (0) target = $region41
    $region40: #{tpu_custom_call.1} parent=1 // pred_region
      %125 = dma.done [#allocation3], 128
    $region41: #{tpu_custom_call.1} parent=1 // pred_fallthru
      _
    // Predicated region
    $region42: #{tpu_custom_call.1} parent=1 // pred_check
      _
    $region43: #{tpu_custom_call.1} parent=1 // pred_check_branch
      %127 = sbr.rel (0) target = $region45
    $region44: #{tpu_custom_call.1} parent=1 // pred_region
      %129 = dma.done [#allocation8], 1024
    $region45: #{tpu_custom_call.1} parent=1 // pred_fallthru
      _
    // Predicated region
    $region46: #{tpu_custom_call.1} parent=1 // pred_check
      _
    $region47: #{tpu_custom_call.1} parent=1 // pred_check_branch
      %131 = sbr.rel (0) target = $region49
    $region48: #{tpu_custom_call.1} parent=1 // pred_region
      %133 = dma.done [#allocation8], 1024
    $region49: #{tpu_custom_call.1} parent=1 // pred_fallthru
      _
    // Predicated region
    $region50: #{tpu_custom_call.1} parent=1 // pred_check
      _
    $region51: #{tpu_custom_call.1} parent=1 // pred_check_branch
      %135 = sbr.rel (0) target = $region53
    $region52: #{tpu_custom_call.1} parent=1 // pred_region
      %137 = dma.done [#allocation11], 12288
    $region53: #{tpu_custom_call.1} parent=1 // pred_fallthru
      _
    // Predicated region
    $region54: #{tpu_custom_call.1} parent=1 // pred_check
      _
    $region55: #{tpu_custom_call.1} parent=1 // pred_check_branch
      %139 = sbr.rel (0) target = $region57
    $region56: #{tpu_custom_call.1} parent=1 // pred_region
      %141 = dma.done [#allocation11], 4096
    $region57: #{tpu_custom_call.1} parent=1 // pred_fallthru
      _
    // Predicated region
    $region58: #{tpu_custom_call.1} parent=1 // pred_check
      _
    $region59: #{tpu_custom_call.1} parent=1 // pred_check_branch
      %143 = sbr.rel (0) target = $region61
    $region60: #{tpu_custom_call.1} parent=1 // pred_region
      %145 = dma.done [#allocation14], 2048
    $region61: #{tpu_custom_call.1} parent=1 // pred_fallthru
      _
    // Predicated region
    $region62: #{tpu_custom_call.1} parent=1 // pred_check
      _
    $region63: #{tpu_custom_call.1} parent=1 // pred_check_branch
      %147 = sbr.rel (0) target = $region65
    $region64: #{tpu_custom_call.1} parent=1 // pred_region
      %149 = dma.done [#allocation14], 192
    $region65: #{tpu_custom_call.1} parent=1 // pred_fallthru
      _
    %150 = sfence
    %s151 = sld [smem:[#allocation2]]
    %s152 = scalar_lea.vmem [#allocation9], %s151
    %v153 = vld [vmem:[%s152] sm:$0x1]
    %s154 = sld [smem:[#allocation2 + $0x1]]
    %s155 = scalar_lea.vmem [#allocation9], %s154
    %v156 = vld [vmem:[%s155] sm:$0x1]
    %s157 = sld [smem:[#allocation2 + $0x2]]
    %s158 = scalar_lea.vmem [#allocation9], %s157
    %v159 = vld [vmem:[%s158] sm:$0x1]
    %s160 = sld [smem:[#allocation2 + $0x3]]
    %s161 = scalar_lea.vmem [#allocation9], %s160
    %v162 = vld [vmem:[%s161] sm:$0x1]
    %s163 = sld [smem:[#allocation2 + $0x4]]
    %s164 = scalar_lea.vmem [#allocation9], %s163
    %v165 = vld [vmem:[%s164] sm:$0x1]
    %s166 = sld [smem:[#allocation2 + $0x5]]
    %s167 = scalar_lea.vmem [#allocation9], %s166
    %v168 = vld [vmem:[%s167] sm:$0x1]
    %s169 = sld [smem:[#allocation2 + $0x6]]
    %s170 = scalar_lea.vmem [#allocation9], %s169
    %v171 = vld [vmem:[%s170] sm:$0x1]
    %s172 = sld [smem:[#allocation2 + $0x7]]
    %s173 = scalar_lea.vmem [#allocation9], %s172
    %v174 = vld [vmem:[%s173] sm:$0x1]
    %v176 = vrot.slane %v156, 7
    %v179 = vrot.slane %v159, 6
    %v182 = vrot.slane %v162, 5
    %v185 = vrot.slane %v165, 4
    %v188 = vrot.slane %v168, 3
    %v191 = vrot.slane %v171, 2
    %v194 = vrot.slane %v174, 1
    %vm196 = vcmask 1040384
    %v197 = vsel %vm196, %v153, %v176
    %vm198 = vcmask 1041408
    %v199 = vsel %vm198, %v197, %v179
    %vm200 = vcmask 1042432
    %v201 = vsel %vm200, %v199, %v182
    %vm202 = vcmask 1043456
    %v203 = vsel %vm202, %v201, %v185
    %vm204 = vcmask 1044480
    %v205 = vsel %vm204, %v203, %v188
    %vm206 = vcmask 1045504
    %v207 = vsel %vm206, %v205, %v191
    %vm208 = vcmask 1046528
    %v209 = vsel %vm208, %v207, %v194
    %v210 = vld [vmem:[#allocation6] sm:$0xff]
    %v211 = vld [vmem:[#allocation10] sm:$0xff]
    %v212 = vld [vmem:[#allocation10 + $0x8] sm:$0xff]
    %v213 = vld [vmem:[#allocation10 + $0x10] sm:$0xff]
    %v214 = vld [vmem:[#allocation10 + $0x18] sm:$0xff]
    %v215 = vld [vmem:[#allocation10 + $0x20] sm:$0xff]
    %v216 = vld [vmem:[#allocation10 + $0x28] sm:$0xff]
    %v217 = vld [vmem:[#allocation10 + $0x30] sm:$0xff]
    %v218 = vld [vmem:[#allocation10 + $0x38] sm:$0xff]
    %v219 = vld [vmem:[#allocation10 + $0x40] sm:$0xff]
    %v220 = vld [vmem:[#allocation10 + $0x48] sm:$0xff]
    %v221 = vld [vmem:[#allocation10 + $0x50] sm:$0xff]
    %v222 = vld [vmem:[#allocation10 + $0x58] sm:$0xff]
    %v223 = vld [vmem:[#allocation10 + $0x60] sm:$0xff]
    %v224 = vld [vmem:[#allocation10 + $0x68] sm:$0xff]
    %v225 = vld [vmem:[#allocation10 + $0x70] sm:$0xff]
    %v226 = vld [vmem:[#allocation10 + $0x78] sm:$0xff]
    %v227 = vld [vmem:[#allocation10 + $0x80] sm:$0xff]
    %v228 = vld [vmem:[#allocation10 + $0x88] sm:$0xff]
    %v229 = vld [vmem:[#allocation10 + $0x90] sm:$0xff]
    %v230 = vld [vmem:[#allocation10 + $0x98] sm:$0xff]
    %v231 = vld [vmem:[#allocation10 + $0xa0] sm:$0xff]
    %v232 = vld [vmem:[#allocation10 + $0xa8] sm:$0xff]
    %v233 = vld [vmem:[#allocation10 + $0xb0] sm:$0xff]
    %v234 = vld [vmem:[#allocation10 + $0xb8] sm:$0xff]
    %v235 = vld [vmem:[#allocation10 + $0xc0] sm:$0xff]
    %v236 = vld [vmem:[#allocation10 + $0xc8] sm:$0xff]
    %v237 = vld [vmem:[#allocation10 + $0xd0] sm:$0xff]
    %v238 = vld [vmem:[#allocation10 + $0xd8] sm:$0xff]
    %v239 = vld [vmem:[#allocation10 + $0xe0] sm:$0xff]
    %v240 = vld [vmem:[#allocation10 + $0xe8] sm:$0xff]
    %v241 = vld [vmem:[#allocation10 + $0xf0] sm:$0xff]
    %v242 = vld [vmem:[#allocation10 + $0xf8] sm:$0xff]
    %v243 = vld [vmem:[#allocation10 + $0x100] sm:$0xff]
    %v244 = vld [vmem:[#allocation10 + $0x108] sm:$0xff]
    %v245 = vld [vmem:[#allocation10 + $0x110] sm:$0xff]
    %v246 = vld [vmem:[#allocation10 + $0x118] sm:$0xff]
    %v247 = vld [vmem:[#allocation10 + $0x120] sm:$0xff]
    %v248 = vld [vmem:[#allocation10 + $0x128] sm:$0xff]
    %v249 = vld [vmem:[#allocation10 + $0x130] sm:$0xff]
    %v250 = vld [vmem:[#allocation10 + $0x138] sm:$0xff]
    %v251 = vld [vmem:[#allocation10 + $0x140] sm:$0xff]
    %v252 = vld [vmem:[#allocation10 + $0x148] sm:$0xff]
    %v253 = vld [vmem:[#allocation10 + $0x150] sm:$0xff]
    %v254 = vld [vmem:[#allocation10 + $0x158] sm:$0xff]
    %v255 = vld [vmem:[#allocation10 + $0x160] sm:$0xff]
    %v256 = vld [vmem:[#allocation10 + $0x168] sm:$0xff]
    %v257 = vld [vmem:[#allocation10 + $0x170] sm:$0xff]
    %v258 = vld [vmem:[#allocation10 + $0x178] sm:$0xff]
    %v259 = vld [vmem:[#allocation15] ss:$4 sm:$0x7]
    %v261 = vperm.slane %v259, 0
    %v262 = vperm.slane %v259, 1
    %v263 = vperm.slane %v259, 2
    %267 = vmatpush.msra.mxu0 %v256
    %268 = vmatpush.msra.mxu0 %v253
    %269 = vmatpush.msra.mxu0 %v250
    %270 = vmatpush.msra.mxu0 %v247
    %271 = vmatpush.msra.mxu0 %v244
    %272 = vmatpush.msra.mxu0 %v241
    %273 = vmatpush.msra.mxu0 %v238
    %274 = vmatpush.msra.mxu0 %v235
    %275 = vmatpush.msra.mxu0 %v232
    %276 = vmatpush.msra.mxu0 %v229
    %277 = vmatpush.msra.mxu0 %v226
    %278 = vmatpush.msra.mxu0 %v223
    %279 = vmatpush.msra.mxu0 %v220
    %280 = vmatpush.msra.mxu0 %v217
    %281 = vmatpush.msra.mxu0 %v214
    %282 = vmatpush.msra.mxu0 %v211
    %283 = vmatmul.f32.gmra.mxu0 %v209
    %v284 = vpop.f32.mrf.mxu0
    %v285 = vadd.f32 %v261, %v284
    %286 = vdwg.mxu0
    %287 = vmatpush.msra.mxu0 %v257
    %288 = vmatpush.msra.mxu0 %v254
    %289 = vmatpush.msra.mxu0 %v251
    %290 = vmatpush.msra.mxu0 %v248
    %291 = vmatpush.msra.mxu0 %v245
    %292 = vmatpush.msra.mxu0 %v242
    %293 = vmatpush.msra.mxu0 %v239
    %294 = vmatpush.msra.mxu0 %v236
    %295 = vmatpush.msra.mxu0 %v233
    %296 = vmatpush.msra.mxu0 %v230
    %297 = vmatpush.msra.mxu0 %v227
    %298 = vmatpush.msra.mxu0 %v224
    %299 = vmatpush.msra.mxu0 %v221
    %300 = vmatpush.msra.mxu0 %v218
    %301 = vmatpush.msra.mxu0 %v215
    %302 = vmatpush.msra.mxu0 %v212
    %303 = vmatmul.f32.gmra.mxu0 %v209
    %v304 = vpop.f32.mrf.mxu0
    %v305 = vadd.f32 %v262, %v304
    %306 = vdwg.mxu0
    %307 = vmatpush.msra.mxu0 %v258
    %308 = vmatpush.msra.mxu0 %v255
    %309 = vmatpush.msra.mxu0 %v252
    %310 = vmatpush.msra.mxu0 %v249
    %311 = vmatpush.msra.mxu0 %v246
    %312 = vmatpush.msra.mxu0 %v243
    %313 = vmatpush.msra.mxu0 %v240
    %314 = vmatpush.msra.mxu0 %v237
    %315 = vmatpush.msra.mxu0 %v234
    %316 = vmatpush.msra.mxu0 %v231
    %317 = vmatpush.msra.mxu0 %v228
    %318 = vmatpush.msra.mxu0 %v225
    %319 = vmatpush.msra.mxu0 %v222
    %320 = vmatpush.msra.mxu0 %v219
    %321 = vmatpush.msra.mxu0 %v216
    %322 = vmatpush.msra.mxu0 %v213
    %323 = vmatmul.f32.gmra.mxu0 %v209
    %v324 = vpop.f32.mrf.mxu0
    %v325 = vadd.f32 %v263, %v324
    %326 = vdwg.mxu0
    %v327 = vld [vmem:[#allocation10 + $0x180] sm:$0xff]
    %v328 = vld [vmem:[#allocation10 + $0x188] sm:$0xff]
    %v329 = vld [vmem:[#allocation10 + $0x190] sm:$0xff]
    %v330 = vld [vmem:[#allocation10 + $0x198] sm:$0xff]
    %v331 = vld [vmem:[#allocation10 + $0x1a0] sm:$0xff]
    %v332 = vld [vmem:[#allocation10 + $0x1a8] sm:$0xff]
    %v333 = vld [vmem:[#allocation10 + $0x1b0] sm:$0xff]
    %v334 = vld [vmem:[#allocation10 + $0x1b8] sm:$0xff]
    %v335 = vld [vmem:[#allocation10 + $0x1c0] sm:$0xff]
    %v336 = vld [vmem:[#allocation10 + $0x1c8] sm:$0xff]
    %v337 = vld [vmem:[#allocation10 + $0x1d0] sm:$0xff]
    %v338 = vld [vmem:[#allocation10 + $0x1d8] sm:$0xff]
    %v339 = vld [vmem:[#allocation10 + $0x1e0] sm:$0xff]
    %v340 = vld [vmem:[#allocation10 + $0x1e8] sm:$0xff]
    %v341 = vld [vmem:[#allocation10 + $0x1f0] sm:$0xff]
    %v342 = vld [vmem:[#allocation10 + $0x1f8] sm:$0xff]
    %v343 = vld [vmem:[#allocation10 + $0x200] sm:$0xff]
    %v344 = vld [vmem:[#allocation10 + $0x208] sm:$0xff]
    %v345 = vld [vmem:[#allocation10 + $0x210] sm:$0xff]
    %v346 = vld [vmem:[#allocation10 + $0x218] sm:$0xff]
    %v347 = vld [vmem:[#allocation10 + $0x220] sm:$0xff]
    %v348 = vld [vmem:[#allocation10 + $0x228] sm:$0xff]
    %v349 = vld [vmem:[#allocation10 + $0x230] sm:$0xff]
    %v350 = vld [vmem:[#allocation10 + $0x238] sm:$0xff]
    %v351 = vld [vmem:[#allocation10 + $0x240] sm:$0xff]
    %v352 = vld [vmem:[#allocation10 + $0x248] sm:$0xff]
    %v353 = vld [vmem:[#allocation10 + $0x250] sm:$0xff]
    %v354 = vld [vmem:[#allocation10 + $0x258] sm:$0xff]
    %v355 = vld [vmem:[#allocation10 + $0x260] sm:$0xff]
    %v356 = vld [vmem:[#allocation10 + $0x268] sm:$0xff]
    %v357 = vld [vmem:[#allocation10 + $0x270] sm:$0xff]
    %v358 = vld [vmem:[#allocation10 + $0x278] sm:$0xff]
    %v359 = vld [vmem:[#allocation10 + $0x280] sm:$0xff]
    %v360 = vld [vmem:[#allocation10 + $0x288] sm:$0xff]
    %v361 = vld [vmem:[#allocation10 + $0x290] sm:$0xff]
    %v362 = vld [vmem:[#allocation10 + $0x298] sm:$0xff]
    %v363 = vld [vmem:[#allocation10 + $0x2a0] sm:$0xff]
    %v364 = vld [vmem:[#allocation10 + $0x2a8] sm:$0xff]
    %v365 = vld [vmem:[#allocation10 + $0x2b0] sm:$0xff]
    %v366 = vld [vmem:[#allocation10 + $0x2b8] sm:$0xff]
    %v367 = vld [vmem:[#allocation10 + $0x2c0] sm:$0xff]
    %v368 = vld [vmem:[#allocation10 + $0x2c8] sm:$0xff]
    %v369 = vld [vmem:[#allocation10 + $0x2d0] sm:$0xff]
    %v370 = vld [vmem:[#allocation10 + $0x2d8] sm:$0xff]
    %v371 = vld [vmem:[#allocation10 + $0x2e0] sm:$0xff]
    %v372 = vld [vmem:[#allocation10 + $0x2e8] sm:$0xff]
    %v373 = vld [vmem:[#allocation10 + $0x2f0] sm:$0xff]
    %v374 = vld [vmem:[#allocation10 + $0x2f8] sm:$0xff]
    %s375 = scalar_lea.vmem [#allocation15], 1
    %v376 = vld [vmem:[%s375] ss:$4 sm:$0x7]
    %v378 = vperm.slane %v376, 0
    %v379 = vperm.slane %v376, 1
    %v380 = vperm.slane %v376, 2
    %384 = vmatpush.msra.mxu0 %v372
    %385 = vmatpush.msra.mxu0 %v369
    %386 = vmatpush.msra.mxu0 %v366
    %387 = vmatpush.msra.mxu0 %v363
    %388 = vmatpush.msra.mxu0 %v360
    %389 = vmatpush.msra.mxu0 %v357
    %390 = vmatpush.msra.mxu0 %v354
    %391 = vmatpush.msra.mxu0 %v351
    %392 = vmatpush.msra.mxu0 %v348
    %393 = vmatpush.msra.mxu0 %v345
    %394 = vmatpush.msra.mxu0 %v342
    %395 = vmatpush.msra.mxu0 %v339
    %396 = vmatpush.msra.mxu0 %v336
    %397 = vmatpush.msra.mxu0 %v333
    %398 = vmatpush.msra.mxu0 %v330
    %399 = vmatpush.msra.mxu0 %v327
    %400 = vmatmul.f32.gmra.mxu0 %v210
    %v401 = vpop.f32.mrf.mxu0
    %v402 = vadd.f32 %v378, %v401
    %403 = vdwg.mxu0
    %404 = vmatpush.msra.mxu0 %v373
    %405 = vmatpush.msra.mxu0 %v370
    %406 = vmatpush.msra.mxu0 %v367
    %407 = vmatpush.msra.mxu0 %v364
    %408 = vmatpush.msra.mxu0 %v361
    %409 = vmatpush.msra.mxu0 %v358
    %410 = vmatpush.msra.mxu0 %v355
    %411 = vmatpush.msra.mxu0 %v352
    %412 = vmatpush.msra.mxu0 %v349
    %413 = vmatpush.msra.mxu0 %v346
    %414 = vmatpush.msra.mxu0 %v343
    %415 = vmatpush.msra.mxu0 %v340
    %416 = vmatpush.msra.mxu0 %v337
    %417 = vmatpush.msra.mxu0 %v334
    %418 = vmatpush.msra.mxu0 %v331
    %419 = vmatpush.msra.mxu0 %v328
    %420 = vmatmul.f32.gmra.mxu0 %v210
    %v421 = vpop.f32.mrf.mxu0
    %v422 = vadd.f32 %v379, %v421
    %423 = vdwg.mxu0
    %424 = vmatpush.msra.mxu0 %v374
    %425 = vmatpush.msra.mxu0 %v371
    %426 = vmatpush.msra.mxu0 %v368
    %427 = vmatpush.msra.mxu0 %v365
    %428 = vmatpush.msra.mxu0 %v362
    %429 = vmatpush.msra.mxu0 %v359
    %430 = vmatpush.msra.mxu0 %v356
    %431 = vmatpush.msra.mxu0 %v353
    %432 = vmatpush.msra.mxu0 %v350
    %433 = vmatpush.msra.mxu0 %v347
    %434 = vmatpush.msra.mxu0 %v344
    %435 = vmatpush.msra.mxu0 %v341
    %436 = vmatpush.msra.mxu0 %v338
    %437 = vmatpush.msra.mxu0 %v335
    %438 = vmatpush.msra.mxu0 %v332
    %439 = vmatpush.msra.mxu0 %v329
    %440 = vmatmul.f32.gmra.mxu0 %v210
    %v441 = vpop.f32.mrf.mxu0
    %v442 = vadd.f32 %v380, %v441
    %443 = vdwg.mxu0
    %v444 = vadd.f32 %v285, %v402
    %v445 = vxor.u32 %v444, 2147483648
    %v446 = vmul.f32 %v445, 1.442695
    %v447 = vpow.pop %v446
    %v448 = vadd.f32 %v447, 1.0
    %v449 = vrcp.pop %v448
    %v450 = vmul.f32 %v448, %v449
    %v451 = vsub.f32 1.0, %v450
    %v452 = vmul.f32 %v449, %v451
    %v453 = vadd.f32 %v449, %v452
    %vm454 = vweird.f32 %v448
    %vm455 = vweird.f32 %v449
    %vm456 = vmor %vm454, %vm455
    %v457 = vsel %vm456, %v449, %v453
    %v458 = vand.u32 2147483647, %v448
    %vm459 = vcmp.eq.f32.partialorder %v458, 8.507059e+37
    %v460 = vand.u32 %v448, 2147483648
    %v461 = vor.u32 1.1754944e-38, %v460
    %v462 = vsel %vm459, %v461, %v457
    %v463 = vmul.f32 1.0, %v462
    %v464 = vadd.f32 %v305, %v422
    %v465 = vxor.u32 %v464, 2147483648
    %v466 = vmul.f32 %v465, 1.442695
    %v467 = vpow.pop %v466
    %v468 = vadd.f32 %v467, 1.0
    %v469 = vrcp.pop %v468
    %v470 = vmul.f32 %v468, %v469
    %v471 = vsub.f32 1.0, %v470
    %v472 = vmul.f32 %v469, %v471
    %v473 = vadd.f32 %v469, %v472
    %vm474 = vweird.f32 %v468
    %vm475 = vweird.f32 %v469
    %vm476 = vmor %vm474, %vm475
    %v477 = vsel %vm476, %v469, %v473
    %v478 = vand.u32 2147483647, %v468
    %vm479 = vcmp.eq.f32.partialorder %v478, 8.507059e+37
    %v480 = vand.u32 %v468, 2147483648
    %v481 = vor.u32 1.1754944e-38, %v480
    %v482 = vsel %vm479, %v481, %v477
    %v483 = vmul.f32 1.0, %v482
    %v484 = vmul.f32 %v463, %v442
    %v485 = vadd.f32 %v325, %v484
    %v486 = vtanh.pop %v485
    %v487 = vsub.f32 %v210, %v486
    %v488 = vmul.f32 %v483, %v487
    %v489 = vadd.f32 %v486, %v488
    %v490 = vlaneseq
    %v491 = vand.u32 %v490, 127
    %vm492 = vcmp.lt.s32.totalorder %v491, 32
    %v493 = vsel %vm492, %v489, 0.0
    %v494 = vld [vmem:[#allocation7] sm:$0xff]
    %v495 = vld [vmem:[#allocation7 + $0x8] sm:$0xff]
    %v496 = vld [vmem:[#allocation7 + $0x10] sm:$0xff]
    %v497 = vld [vmem:[#allocation7 + $0x18] sm:$0xff]
    %v498 = vld [vmem:[#allocation7 + $0x20] sm:$0xff]
    %v499 = vld [vmem:[#allocation7 + $0x28] sm:$0xff]
    %v500 = vld [vmem:[#allocation7 + $0x30] sm:$0xff]
    %v501 = vld [vmem:[#allocation7 + $0x38] sm:$0xff]
    %v503 = vrot.slane %v493, 1
    %v504 = vrot.slane %v493, 2
    %v505 = vrot.slane %v493, 3
    %v506 = vrot.slane %v493, 4
    %v507 = vrot.slane %v493, 5
    %v508 = vrot.slane %v493, 6
    %v509 = vrot.slane %v493, 7
    %v510 = vperm.slane %v493, 0
    %v511 = vperm.slane %v503, 0
    %v512 = vperm.slane %v504, 0
    %v513 = vperm.slane %v505, 0
    %v514 = vperm.slane %v506, 0
    %v515 = vperm.slane %v507, 0
    %v516 = vperm.slane %v508, 0
    %v517 = vperm.slane %v509, 0
    %v526 = vmul.f32 %v510, %v494
    %v527 = vmul.f32 %v511, %v495
    %v528 = vmul.f32 %v512, %v496
    %v529 = vmul.f32 %v513, %v497
    %v530 = vmul.f32 %v514, %v498
    %v531 = vmul.f32 %v515, %v499
    %v532 = vmul.f32 %v516, %v500
    %v533 = vmul.f32 %v517, %v501
    %534 = vadd.xlane.f32.xlu0 %v526
    %v535 = vpop.xlane.xlu0 %534
    %536 = vadd.xlane.f32.xlu0 %v527
    %v537 = vpop.xlane.xlu0 %536
    %538 = vadd.xlane.f32.xlu0 %v528
    %v539 = vpop.xlane.xlu0 %538
    %540 = vadd.xlane.f32.xlu0 %v529
    %v541 = vpop.xlane.xlu0 %540
    %542 = vadd.xlane.f32.xlu0 %v530
    %v543 = vpop.xlane.xlu0 %542
    %544 = vadd.xlane.f32.xlu0 %v531
    %v545 = vpop.xlane.xlu0 %544
    %546 = vadd.xlane.f32.xlu0 %v532
    %v547 = vpop.xlane.xlu0 %546
    %548 = vadd.xlane.f32.xlu0 %v533
    %v549 = vpop.xlane.xlu0 %548
    %v558 = vperm.slane %v535, %v491
    %v559 = vperm.slane %v537, %v491
    %v560 = vperm.slane %v539, %v491
    %v561 = vperm.slane %v541, %v491
    %v562 = vperm.slane %v543, %v491
    %v563 = vperm.slane %v545, %v491
    %v564 = vperm.slane %v547, %v491
    %v565 = vperm.slane %v549, %v491
    %vm566 = vcmask 1041409
    %v567 = vsel %vm566, %v559, %v558
    %vm568 = vcmask 1042434
    %v569 = vsel %vm568, %v560, %v567
    %vm570 = vcmask 1043459
    %v571 = vsel %vm570, %v561, %v569
    %vm572 = vcmask 1044484
    %v573 = vsel %vm572, %v562, %v571
    %vm574 = vcmask 1045509
    %v575 = vsel %vm574, %v563, %v573
    %vm576 = vcmask 1046534
    %v577 = vsel %vm576, %v564, %v575
    %vm578 = vcmask 1047559
    %v579 = vsel %vm578, %v565, %v577
    %vm581 = vcmask 64512
    %v582 = vsel %vm581, %v579, -inf
    %583 = vmax.xlane.f32.xlu0 %v582
    %v584 = vpop.xlane.xlu0 %583
    %v586 = vperm.slane %v584, 0
    %v587 = vperm.slane %v584, 1
    %v588 = vperm.slane %v584, 2
    %v589 = vperm.slane %v584, 3
    %v590 = vperm.slane %v584, 4
    %v591 = vperm.slane %v584, 5
    %v592 = vperm.slane %v584, 6
    %v593 = vperm.slane %v584, 7
    %v602 = vsub.f32 %v535, %v586
    %v603 = vsub.f32 %v537, %v587
    %v604 = vsub.f32 %v539, %v588
    %v605 = vsub.f32 %v541, %v589
    %v606 = vsub.f32 %v543, %v590
    %v607 = vsub.f32 %v545, %v591
    %v608 = vsub.f32 %v547, %v592
    %v609 = vsub.f32 %v549, %v593
    %v610 = vmul.f32 %v602, 1.442695
    %v611 = vpow.pop %v610
    %v612 = vmul.f32 %v603, 1.442695
    %v613 = vpow.pop %v612
    %v614 = vmul.f32 %v604, 1.442695
    %v615 = vpow.pop %v614
    %v616 = vmul.f32 %v605, 1.442695
    %v617 = vpow.pop %v616
    %v618 = vmul.f32 %v606, 1.442695
    %v619 = vpow.pop %v618
    %v620 = vmul.f32 %v607, 1.442695
    %v621 = vpow.pop %v620
    %v622 = vmul.f32 %v608, 1.442695
    %v623 = vpow.pop %v622
    %v624 = vmul.f32 %v609, 1.442695
    %v625 = vpow.pop %v624
    %634 = vset.pattern.permute.xlu0 0
    %635 = vperm.xlu0 %634, %v611
    %v636 = vpop.permute.xlu0 %635
    %637 = vset.pattern.permute.xlu0 0
    %638 = vperm.xlu0 %637, %v613
    %v639 = vpop.permute.xlu0 %638
    %640 = vset.pattern.permute.xlu0 0
    %641 = vperm.xlu0 %640, %v615
    %v642 = vpop.permute.xlu0 %641
    %643 = vset.pattern.permute.xlu0 0
    %644 = vperm.xlu0 %643, %v617
    %v645 = vpop.permute.xlu0 %644
    %646 = vset.pattern.permute.xlu0 0
    %647 = vperm.xlu0 %646, %v619
    %v648 = vpop.permute.xlu0 %647
    %649 = vset.pattern.permute.xlu0 0
    %650 = vperm.xlu0 %649, %v621
    %v651 = vpop.permute.xlu0 %650
    %652 = vset.pattern.permute.xlu0 0
    %653 = vperm.xlu0 %652, %v623
    %v654 = vpop.permute.xlu0 %653
    %655 = vset.pattern.permute.xlu0 0
    %656 = vperm.xlu0 %655, %v625
    %v657 = vpop.permute.xlu0 %656
    %v658 = vperm.slane %v636, %v491
    %v659 = vperm.slane %v639, %v491
    %v660 = vperm.slane %v642, %v491
    %v661 = vperm.slane %v645, %v491
    %v662 = vperm.slane %v648, %v491
    %v663 = vperm.slane %v651, %v491
    %v664 = vperm.slane %v654, %v491
    %v665 = vperm.slane %v657, %v491
    %v666 = vsel %vm566, %v659, %v658
    %v667 = vsel %vm568, %v660, %v666
    %v668 = vsel %vm570, %v661, %v667
    %v669 = vsel %vm572, %v662, %v668
    %v670 = vsel %vm574, %v663, %v669
    %v671 = vsel %vm576, %v664, %v670
    %v672 = vsel %vm578, %v665, %v671
    %v674 = vsel %vm581, %v672, 0.0
    %675 = vadd.xlane.f32.xlu0 %v674
    %v676 = vpop.xlane.xlu0 %675
    %v677 = vrcp.pop %v676
    %v678 = vmul.f32 %v676, %v677
    %v679 = vsub.f32 1.0, %v678
    %v680 = vmul.f32 %v677, %v679
    %v681 = vadd.f32 %v677, %v680
    %vm682 = vweird.f32 %v676
    %vm683 = vweird.f32 %v677
    %vm684 = vmor %vm682, %vm683
    %v685 = vsel %vm684, %v677, %v681
    %v686 = vand.u32 2147483647, %v676
    %vm687 = vcmp.eq.f32.partialorder %v686, 8.507059e+37
    %v688 = vand.u32 %v676, 2147483648
    %v689 = vor.u32 1.1754944e-38, %v688
    %v690 = vsel %vm687, %v689, %v685
    %v692 = vperm.slane %v690, 0
    %v693 = vperm.slane %v690, 1
    %v694 = vperm.slane %v690, 2
    %v695 = vperm.slane %v690, 3
    %v696 = vperm.slane %v690, 4
    %v697 = vperm.slane %v690, 5
    %v698 = vperm.slane %v690, 6
    %v699 = vperm.slane %v690, 7
    %v708 = vmul.f32 %v611, %v692
    %v709 = vmul.f32 %v613, %v693
    %v710 = vmul.f32 %v615, %v694
    %v711 = vmul.f32 %v617, %v695
    %v712 = vmul.f32 %v619, %v696
    %v713 = vmul.f32 %v621, %v697
    %v714 = vmul.f32 %v623, %v698
    %v715 = vmul.f32 %v625, %v699
    %717 = vset.pattern.permute.xlu0 0
    %718 = vperm.xlu0 %717, %v708
    %v719 = vpop.permute.xlu0 %718
    %722 = vset.pattern.permute.xlu0 0
    %723 = vperm.xlu0 %722, %v709
    %v724 = vpop.permute.xlu0 %723
    %727 = vset.pattern.permute.xlu0 0
    %728 = vperm.xlu0 %727, %v710
    %v729 = vpop.permute.xlu0 %728
    %732 = vset.pattern.permute.xlu0 0
    %733 = vperm.xlu0 %732, %v711
    %v734 = vpop.permute.xlu0 %733
    %737 = vset.pattern.permute.xlu0 0
    %738 = vperm.xlu0 %737, %v712
    %v739 = vpop.permute.xlu0 %738
    %742 = vset.pattern.permute.xlu0 0
    %743 = vperm.xlu0 %742, %v713
    %v744 = vpop.permute.xlu0 %743
    %747 = vset.pattern.permute.xlu0 0
    %748 = vperm.xlu0 %747, %v714
    %v749 = vpop.permute.xlu0 %748
    %752 = vset.pattern.permute.xlu0 0
    %753 = vperm.xlu0 %752, %v715
    %v754 = vpop.permute.xlu0 %753
    %v756 = vmul.f32 %v719, %v494
    %v757 = vmul.f32 %v724, %v495
    %v758 = vmul.f32 %v729, %v496
    %v759 = vmul.f32 %v734, %v497
    %v760 = vmul.f32 %v739, %v498
    %v761 = vmul.f32 %v744, %v499
    %v762 = vmul.f32 %v749, %v500
    %v763 = vmul.f32 %v754, %v501
    %v764 = vrot.slane %v756, 4
    %v765 = vadd.f32 %v756, %v764
    %v766 = vrot.slane %v765, 2
    %v767 = vadd.f32 %v765, %v766
    %v768 = vrot.slane %v767, 1
    %v769 = vadd.f32 %v767, %v768
    %v770 = vrot.slane %v757, 4
    %v771 = vadd.f32 %v757, %v770
    %v772 = vrot.slane %v771, 2
    %v773 = vadd.f32 %v771, %v772
    %v774 = vrot.slane %v773, 1
    %v775 = vadd.f32 %v773, %v774
    %v776 = vrot.slane %v758, 4
    %v777 = vadd.f32 %v758, %v776
    %v778 = vrot.slane %v777, 2
    %v779 = vadd.f32 %v777, %v778
    %v780 = vrot.slane %v779, 1
    %v781 = vadd.f32 %v779, %v780
    %v782 = vrot.slane %v759, 4
    %v783 = vadd.f32 %v759, %v782
    %v784 = vrot.slane %v783, 2
    %v785 = vadd.f32 %v783, %v784
    %v786 = vrot.slane %v785, 1
    %v787 = vadd.f32 %v785, %v786
    %v788 = vrot.slane %v760, 4
    %v789 = vadd.f32 %v760, %v788
    %v790 = vrot.slane %v789, 2
    %v791 = vadd.f32 %v789, %v790
    %v792 = vrot.slane %v791, 1
    %v793 = vadd.f32 %v791, %v792
    %v794 = vrot.slane %v761, 4
    %v795 = vadd.f32 %v761, %v794
    %v796 = vrot.slane %v795, 2
    %v797 = vadd.f32 %v795, %v796
    %v798 = vrot.slane %v797, 1
    %v799 = vadd.f32 %v797, %v798
    %v800 = vrot.slane %v762, 4
    %v801 = vadd.f32 %v762, %v800
    %v802 = vrot.slane %v801, 2
    %v803 = vadd.f32 %v801, %v802
    %v804 = vrot.slane %v803, 1
    %v805 = vadd.f32 %v803, %v804
    %v806 = vrot.slane %v763, 4
    %v807 = vadd.f32 %v763, %v806
    %v808 = vrot.slane %v807, 2
    %v809 = vadd.f32 %v807, %v808
    %v810 = vrot.slane %v809, 1
    %v811 = vadd.f32 %v809, %v810
    %v820 = vsel %vm566, %v775, %v769
    %v821 = vsel %vm568, %v781, %v820
    %v822 = vsel %vm570, %v787, %v821
    %v823 = vsel %vm572, %v793, %v822
    %v824 = vsel %vm574, %v799, %v823
    %v825 = vsel %vm576, %v805, %v824
    %v826 = vsel %vm578, %v811, %v825
    %v828 = vld [vmem:[#allocation12] sm:$0xff]
    %v829 = vld [vmem:[#allocation12 + $0x8] sm:$0xff]
    %v830 = vld [vmem:[#allocation12 + $0x10] sm:$0xff]
    %v831 = vld [vmem:[#allocation12 + $0x18] sm:$0xff]
    %v832 = vld [vmem:[#allocation12 + $0x20] sm:$0xff]
    %v833 = vld [vmem:[#allocation12 + $0x28] sm:$0xff]
    %v834 = vld [vmem:[#allocation12 + $0x30] sm:$0xff]
    %v835 = vld [vmem:[#allocation12 + $0x38] sm:$0xff]
    %v836 = vld [vmem:[#allocation12 + $0x40] sm:$0xff]
    %v837 = vld [vmem:[#allocation12 + $0x48] sm:$0xff]
    %v838 = vld [vmem:[#allocation12 + $0x50] sm:$0xff]
    %v839 = vld [vmem:[#allocation12 + $0x58] sm:$0xff]
    %v840 = vld [vmem:[#allocation12 + $0x60] sm:$0xff]
    %v841 = vld [vmem:[#allocation12 + $0x68] sm:$0xff]
    %v842 = vld [vmem:[#allocation12 + $0x70] sm:$0xff]
    %v843 = vld [vmem:[#allocation12 + $0x78] sm:$0xff]
    %v844 = vld [vmem:[#allocation12 + $0x80] sm:$0xff]
    %v845 = vld [vmem:[#allocation12 + $0x88] sm:$0xff]
    %v846 = vld [vmem:[#allocation12 + $0x90] sm:$0xff]
    %v847 = vld [vmem:[#allocation12 + $0x98] sm:$0xff]
    %v848 = vld [vmem:[#allocation12 + $0xa0] sm:$0xff]
    %v849 = vld [vmem:[#allocation12 + $0xa8] sm:$0xff]
    %v850 = vld [vmem:[#allocation12 + $0xb0] sm:$0xff]
    %v851 = vld [vmem:[#allocation12 + $0xb8] sm:$0xff]
    %v852 = vld [vmem:[#allocation12 + $0xc0] sm:$0xff]
    %v853 = vld [vmem:[#allocation12 + $0xc8] sm:$0xff]
    %v854 = vld [vmem:[#allocation12 + $0xd0] sm:$0xff]
    %v855 = vld [vmem:[#allocation12 + $0xd8] sm:$0xff]
    %v856 = vld [vmem:[#allocation12 + $0xe0] sm:$0xff]
    %v857 = vld [vmem:[#allocation12 + $0xe8] sm:$0xff]
    %v858 = vld [vmem:[#allocation12 + $0xf0] sm:$0xff]
    %v859 = vld [vmem:[#allocation12 + $0xf8] sm:$0xff]
    %v860 = vld [vmem:[#allocation15 + $0x2] sm:$0x1]
    %v861 = vperm.slane %v860, 0
    %862 = vmatpush.msra.mxu0 %v843
    %863 = vmatpush.msra.mxu0 %v842
    %864 = vmatpush.msra.mxu0 %v841
    %865 = vmatpush.msra.mxu0 %v840
    %866 = vmatpush.msra.mxu0 %v839
    %867 = vmatpush.msra.mxu0 %v838
    %868 = vmatpush.msra.mxu0 %v837
    %869 = vmatpush.msra.mxu0 %v836
    %870 = vmatpush.msra.mxu0 %v835
    %871 = vmatpush.msra.mxu0 %v834
    %872 = vmatpush.msra.mxu0 %v833
    %873 = vmatpush.msra.mxu0 %v832
    %874 = vmatpush.msra.mxu0 %v831
    %875 = vmatpush.msra.mxu0 %v830
    %876 = vmatpush.msra.mxu0 %v829
    %877 = vmatpush.msra.mxu0 %v828
    %878 = vmatmul.f32.gmra.mxu0 %v493
    %v879 = vpop.f32.mrf.mxu0
    %v880 = vadd.f32 %v861, %v879
    %881 = vdwg.mxu0
    %882 = vmatpush.msra.mxu0 %v859
    %883 = vmatpush.msra.mxu0 %v858
    %884 = vmatpush.msra.mxu0 %v857
    %885 = vmatpush.msra.mxu0 %v856
    %886 = vmatpush.msra.mxu0 %v855
    %887 = vmatpush.msra.mxu0 %v854
    %888 = vmatpush.msra.mxu0 %v853
    %889 = vmatpush.msra.mxu0 %v852
    %890 = vmatpush.msra.mxu0 %v851
    %891 = vmatpush.msra.mxu0 %v850
    %892 = vmatpush.msra.mxu0 %v849
    %893 = vmatpush.msra.mxu0 %v848
    %894 = vmatpush.msra.mxu0 %v847
    %895 = vmatpush.msra.mxu0 %v846
    %896 = vmatpush.msra.mxu0 %v845
    %897 = vmatpush.msra.mxu0 %v844
    %898 = vmatmul.f32.gmra.mxu0 %v826
    %v899 = vpop.f32.mrf.mxu0
    %v900 = vadd.f32 %v880, %v899
    %901 = vdwg.mxu0
    %v902 = vtanh.pop %v900
    %v903 = vld [vmem:[#allocation13] sm:$0xff]
    %v904 = vld [vmem:[#allocation13 + $0x8] sm:$0xff]
    %v905 = vld [vmem:[#allocation13 + $0x10] sm:$0xff]
    %v906 = vld [vmem:[#allocation13 + $0x18] sm:$0xff]
    %v907 = vld [vmem:[#allocation13 + $0x20] sm:$0xff]
    %v908 = vld [vmem:[#allocation13 + $0x28] sm:$0xff]
    %v909 = vld [vmem:[#allocation13 + $0x30] sm:$0xff]
    %v910 = vld [vmem:[#allocation13 + $0x38] sm:$0xff]
    %v911 = vld [vmem:[#allocation13 + $0x40] sm:$0xff]
    %v912 = vld [vmem:[#allocation13 + $0x48] sm:$0xff]
    %v913 = vld [vmem:[#allocation13 + $0x50] sm:$0xff]
    %v914 = vld [vmem:[#allocation13 + $0x58] sm:$0xff]
    %v915 = vld [vmem:[#allocation13 + $0x60] sm:$0xff]
    %v916 = vld [vmem:[#allocation13 + $0x68] sm:$0xff]
    %v917 = vld [vmem:[#allocation13 + $0x70] sm:$0xff]
    %v918 = vld [vmem:[#allocation13 + $0x78] sm:$0xff]
    %v919 = vld [vmem:[#allocation15 + $0x3] sm:$0x1]
    %v920 = vperm.slane %v919, 0
    %921 = vmatpush.msra.mxu0 %v918
    %922 = vmatpush.msra.mxu0 %v917
    %923 = vmatpush.msra.mxu0 %v916
    %924 = vmatpush.msra.mxu0 %v915
    %925 = vmatpush.msra.mxu0 %v914
    %926 = vmatpush.msra.mxu0 %v913
    %927 = vmatpush.msra.mxu0 %v912
    %928 = vmatpush.msra.mxu0 %v911
    %929 = vmatpush.msra.mxu0 %v910
    %930 = vmatpush.msra.mxu0 %v909
    %931 = vmatpush.msra.mxu0 %v908
    %932 = vmatpush.msra.mxu0 %v907
    %933 = vmatpush.msra.mxu0 %v906
    %934 = vmatpush.msra.mxu0 %v905
    %935 = vmatpush.msra.mxu0 %v904
    %936 = vmatpush.msra.mxu0 %v903
    %937 = vmatmul.f32.gmra.mxu0 %v902
    %v938 = vpop.f32.mrf.mxu0
    %v939 = vadd.f32 %v920, %v938
    %940 = vdwg.mxu0
    %941 = vmax.xlane.f32.xlu0 %v939
    %v942 = vpop.xlane.xlu0 %941
    %v943 = vsub.f32 %v939, %v942
    %v944 = vmul.f32 %v943, 1.442695
    %v945 = vpow.pop %v944
    %946 = vadd.xlane.f32.xlu0 %v945
    %v947 = vpop.xlane.xlu0 %946
    %v948 = vrcp.pop %v947
    %v949 = vmul.f32 %v947, %v948
    %v950 = vsub.f32 1.0, %v949
    %v951 = vmul.f32 %v948, %v950
    %v952 = vadd.f32 %v948, %v951
    %vm953 = vweird.f32 %v947
    %vm954 = vweird.f32 %v948
    %vm955 = vmor %vm953, %vm954
    %v956 = vsel %vm955, %v948, %v952
    %v957 = vand.u32 2147483647, %v947
    %vm958 = vcmp.eq.f32.partialorder %v957, 8.507059e+37
    %v959 = vand.u32 %v947, 2147483648
    %v960 = vor.u32 1.1754944e-38, %v959
    %v961 = vsel %vm958, %v960, %v956
    %v962 = vmul.f32 %v945, %v961
    %963 = vst [vmem:[#allocation16] sm:$0xff] %v962
    %964 = vst [vmem:[#allocation17] sm:$0xff] %v493
    // Predicated region
    $region66: #{tpu_custom_call.1} parent=1 // pred_check
      _
    $region67: #{tpu_custom_call.1} parent=1 // pred_check_branch
      %966 = sbr.rel (0) target = $region69
    $region68: #{tpu_custom_call.1} parent=1 // pred_region
      %968 = vsyncadd [#allocation4], 0
      %s970 = sshll.u32 [#allocation16], 4
      %s971 = int_to_ptr.vmem [resolvable:$true] %s970
      %s972 = sshll.u32 %s8, 4
      %s973 = int_to_ptr.hbm [resolvable:$true] %s972
      %975 = dma.vmem_to_hbm [thread:$0]  %s971, 128, %s973, [#allocation4]
    $region69: #{tpu_custom_call.1} parent=1 // pred_fallthru
      _
    // Predicated region
    $region70: #{tpu_custom_call.1} parent=1 // pred_check
      _
    $region71: #{tpu_custom_call.1} parent=1 // pred_check_branch
      %977 = sbr.rel (0) target = $region73
    $region72: #{tpu_custom_call.1} parent=1 // pred_region
      %979 = vsyncadd [#allocation18], 0
      %s981 = sshll.u32 [#allocation17], 4
      %s982 = int_to_ptr.vmem [resolvable:$true] %s981
      %s983 = sshll.u32 %s9, 4
      %s984 = int_to_ptr.hbm [resolvable:$true] %s983
      %986 = dma.vmem_to_hbm [thread:$0]  %s982, 128, %s984, [#allocation18]
    $region73: #{tpu_custom_call.1} parent=1 // pred_fallthru
      _
    // Predicated region
    $region74: #{tpu_custom_call.1} parent=1 // pred_check
      _
    $region75: #{tpu_custom_call.1} parent=1 // pred_check_branch
      %988 = sbr.rel (0) target = $region77
    $region76: #{tpu_custom_call.1} parent=1 // pred_region
      %990 = dma.done [#allocation4], 128
    $region77: #{tpu_custom_call.1} parent=1 // pred_fallthru
      _
    // Predicated region
    $region78: #{tpu_custom_call.1} parent=1 // pred_check
      _
    $region79: #{tpu_custom_call.1} parent=1 // pred_check_branch
      %992 = sbr.rel (0) target = $region81
    $region80: #{tpu_custom_call.1} parent=1 // pred_region
      %994 = dma.done [#allocation18], 128
    $region81: #{tpu_custom_call.1} parent=1 // pred_fallthru
      _
    %995 = vsyncpa [#allocation3], 1
    %996 = vsyncpa [#allocation8], 1
    %997 = vsyncpa [#allocation11], 1
    %998 = vsyncpa [#allocation14], 1
    %999 = vsyncpa [#allocation4], 1
    %1000 = vsyncpa [#allocation18], 1
    %1001 = vsyncpa [#allocation5], 1

</llo_original>
